<compile_context>
chip_gen: v5e
topology: v5e:2x2
jax: 0.10.0
libtpu: 0.0.40
codegen_flags: <defaults>
</compile_context>

<pallas_src>
import functools

import jax
import jax.numpy as jnp
from jax.experimental import pallas as pl
from jax.experimental.pallas import tpu as pltpu


def _round_up(v, m):
    return ((v + m - 1) // m) * m


def _softplus(x):
    # numerically stable softplus = max(x,0) + log1p(exp(-|x|))
    return jnp.maximum(x, 0.0) + jnp.log1p(jnp.exp(-jnp.abs(x)))


def _decoder_kernel(main_ref, z_ref,
                    w1m_ref, w1z_ref, b1_ref,
                    w2_ref, b2_ref, w3_ref, b3_ref, w4_ref, b4_ref,
                    w5_ref, b5_ref,
                    out_ref, *, y_dim):
    f32 = jnp.float32
    bf16 = jnp.bfloat16

    # Fused layer 1: concat([x, r, z]) @ W1 == [x|r]@W1m + z@W1z.  When z is
    # fed as a per-batch (1, d_model) block, its (1, hidden) product broadcasts
    # over the row tile.
    h = jnp.dot(main_ref[...], w1m_ref[...], preferred_element_type=f32)
    h = h + jnp.dot(z_ref[...], w1z_ref[...], preferred_element_type=f32)
    h = jnp.maximum(h + b1_ref[...], 0.0)

    # Hidden layers 2..4: bf16 MXU passes, f32 accumulate / bias / ReLU.
    for w_ref, b_ref in ((w2_ref, b2_ref), (w3_ref, b3_ref), (w4_ref, b4_ref)):
        h = jnp.maximum(
            jnp.dot(h.astype(bf16), w_ref[...], preferred_element_type=f32)
            + b_ref[...], 0.0)

    stats = (jnp.dot(h.astype(bf16), w5_ref[...], preferred_element_type=f32)
             + b5_ref[...])

    # sigma transform only on columns [y_dim, 2*y_dim); single full-tile store.
    col = jax.lax.broadcasted_iota(jnp.int32, stats.shape, dimension=1)
    sig = 0.1 + 0.9 * _softplus(stats)
    out_ref[...] = jnp.where(col >= y_dim, sig, stats)


def prepare_decoder_params(params, x_dim, d_model):
    """One-time (outside the hot path) split + bf16 cast of the weights."""
    k_main = x_dim + d_model
    w1 = jnp.asarray(params["w1"], jnp.float32)
    prep = {
        "w1m": w1[:k_main].astype(jnp.bfloat16),          # [x|r] rows of W1
        "w1z": w1[k_main:].astype(jnp.bfloat16),           # z rows of W1
        "b1": jnp.asarray(params["b1"], jnp.float32).reshape(1, -1),
    }
    for li in range(2, 6):
        prep[f"w{li}"] = jnp.asarray(params[f"w{li}"], jnp.float32).astype(jnp.bfloat16)
        prep[f"b{li}"] = jnp.asarray(params[f"b{li}"], jnp.float32).reshape(1, -1)
    return prep


def decoder_forward(prep, r, z, x_tgt, *, y_dim=1, tm=1024):
    """r: (B, N, d_model); z: (B, d_model) or (B, N, d_model); x_tgt: (B, N, x_dim)."""
    B, N, d_model = r.shape
    x_dim = x_tgt.shape[-1]
    k_main = x_dim + d_model
    hidden = prep["w2"].shape[0]
    out_dim = 2 * y_dim

    # Row tiling: multiple of 8, clamped to (padded) N.
    n8 = _round_up(N, 8)
    tm_eff = min(_round_up(tm, 8), n8)
    n_pad = _round_up(N, tm_eff)

    # Single lane-contiguous layer-1 operand [x | r], bf16 for the MXU.
    main = jnp.concatenate(
        [x_tgt.astype(jnp.bfloat16), r.astype(jnp.bfloat16)], axis=-1)
    main = jnp.pad(main, ((0, 0), (0, n_pad - N), (0, 0)))

    if z.ndim == 2:
        # Per-batch z block; never broadcast to (B, N, d_model).
        z_in = z.astype(jnp.bfloat16)[:, None, :]                 # (B, 1, d_model)
        z_spec = pl.BlockSpec((pl.Squeezed(), 1, d_model), lambda b, i: (b, 0, 0))
        z_rows = 1
    else:
        z_in = jnp.pad(z.astype(jnp.bfloat16), ((0, 0), (0, n_pad - N), (0, 0)))
        z_spec = pl.BlockSpec((pl.Squeezed(), tm_eff, d_model),
                              lambda b, i: (b, i, 0))
        z_rows = tm_eff

    grid = (B, n_pad // tm_eff)

    def full_spec(shape):
        n = len(shape)
        return pl.BlockSpec(shape, lambda b, i, _n=n: (0,) * _n)

    weight_keys = ("w1m", "w1z", "b1", "w2", "b2", "w3", "b3", "w4", "b4",
                   "w5", "b5")
    weights = [prep[k] for k in weight_keys]

    in_specs = [
        pl.BlockSpec((pl.Squeezed(), tm_eff, k_main), lambda b, i: (b, i, 0)),
        z_spec,
    ] + [full_spec(w.shape) for w in weights]
    out_spec = pl.BlockSpec((pl.Squeezed(), tm_eff, out_dim),
                            lambda b, i: (b, i, 0))

    # VMEM budget: double-buffered I/O blocks + (default double-buffered)
    # weights + a few live f32 intermediates; clamp to <= 32 MiB (v7x-safe).
    w_bytes = 2 * sum(int(w.size) * w.dtype.itemsize for w in weights)
    io_bytes = 2 * (tm_eff * k_main * 2 + z_rows * d_model * 2
                    + tm_eff * out_dim * 4)
    scratch_bytes = 4 * tm_eff * hidden * 4
    vmem_limit = int(min(32 * 1024 * 1024,
                         max(16 * 1024 * 1024,
                             2 * (w_bytes + io_bytes + scratch_bytes))))

    stats = pl.pallas_call(
        functools.partial(_decoder_kernel, y_dim=y_dim),
        out_shape=jax.ShapeDtypeStruct((B, n_pad, out_dim), jnp.float32),
        grid=grid,
        in_specs=in_specs,
        out_specs=out_spec,
        compiler_params=pltpu.CompilerParams(
            dimension_semantics=("parallel", "parallel"),
            vmem_limit_bytes=vmem_limit),
    )(main, z_in, *weights)

    mu = stats[:, :N, :y_dim]
    sigma = stats[:, :N, y_dim:2 * y_dim]
    return mu, sigma


def init_params(key, x_dim, d_model, y_dim=1):
    hidden = d_model
    in_dim = x_dim + 2 * d_model
    dims = [(in_dim, hidden), (hidden, hidden), (hidden, hidden),
            (hidden, hidden), (hidden, 2 * y_dim)]
    params = {}
    keys = jax.random.split(key, 2 * len(dims))
    for li, (fan_in, fan_out) in enumerate(dims, start=1):
        bound = 1.0 / jnp.sqrt(fan_in)
        params[f"w{li}"] = jax.random.uniform(
            keys[2 * (li - 1)], (fan_in, fan_out), jnp.float32, -bound, bound)
        params[f"b{li}"] = jax.random.uniform(
            keys[2 * (li - 1) + 1], (1, fan_out), jnp.float32, -bound, bound)
    return params


def reference_forward(params, r, z, x_tgt, y_dim=1):
    B, N, d_model = r.shape
    if z.ndim == 2:
        z = jnp.broadcast_to(z[:, None, :], (B, N, d_model))
    h = jnp.concatenate([x_tgt, r, z], axis=-1)
    for li in range(1, 5):
        h = jnp.maximum(h @ params[f"w{li}"] + params[f"b{li}"][0], 0.0)
    stats = h @ params["w5"] + params["b5"][0]
    mu, lsig = stats[..., :y_dim], stats[..., y_dim:]
    return mu, 0.1 + 0.9 * jax.nn.softplus(lsig)


if __name__ == "__main__":
    key = jax.random.PRNGKey(0)
    B, N = 2, 8
    x_dim, d_model, y_dim = 4, 32, 1

    kp, kr, kz, kx = jax.random.split(key, 4)
    params = init_params(kp, x_dim, d_model, y_dim)
    prep = prepare_decoder_params(params, x_dim, d_model)

    r = jax.random.normal(kr, (B, N, d_model), jnp.float32)
    z2 = jax.random.normal(kz, (B, d_model), jnp.float32)          # 2-D z path
    z3 = jnp.broadcast_to(z2[:, None, :], (B, N, d_model))         # 3-D z path
    x_tgt = jax.random.normal(kx, (B, N, x_dim), jnp.float32)

    fwd = jax.jit(functools.partial(decoder_forward, y_dim=y_dim))

    # bf16 MXU operands -> loosened tolerances vs the f32 reference.
    atol = rtol = 2e-2

    mu, sigma = fwd(prep, r, z2, x_tgt)
    jax.block_until_ready((mu, sigma))
    mu_ref, sigma_ref = reference_forward(params, r, z2, x_tgt, y_dim)
    assert mu.shape == (B, N, y_dim) and sigma.shape == (B, N, y_dim)
    assert jnp.allclose(mu, mu_ref, atol=atol, rtol=rtol)
    assert jnp.allclose(sigma, sigma_ref, atol=atol, rtol=rtol)

    mu3, sigma3 = fwd(prep, r, z3, x_tgt)
    jax.block_until_ready((mu3, sigma3))
    assert jnp.allclose(mu3, mu_ref, atol=atol, rtol=rtol)
    assert jnp.allclose(sigma3, sigma_ref, atol=atol, rtol=rtol)

    print("KERNEL_OK")
</pallas_src>

<mosaic_0001>
module attributes {stable_mosaic.version = 11 : i64} {
  func.func @_decoder_kernel(%arg0: i32, %arg1: i32, %arg2: memref<1x8x36xbf16, #tpu.memory_space<vmem>>, %arg3: memref<1x1x32xbf16, #tpu.memory_space<vmem>>, %arg4: memref<36x32xbf16, #tpu.memory_space<vmem>>, %arg5: memref<32x32xbf16, #tpu.memory_space<vmem>>, %arg6: memref<1x32xf32, #tpu.memory_space<vmem>>, %arg7: memref<32x32xbf16, #tpu.memory_space<vmem>>, %arg8: memref<1x32xf32, #tpu.memory_space<vmem>>, %arg9: memref<32x32xbf16, #tpu.memory_space<vmem>>, %arg10: memref<1x32xf32, #tpu.memory_space<vmem>>, %arg11: memref<32x32xbf16, #tpu.memory_space<vmem>>, %arg12: memref<1x32xf32, #tpu.memory_space<vmem>>, %arg13: memref<32x2xbf16, #tpu.memory_space<vmem>>, %arg14: memref<1x2xf32, #tpu.memory_space<vmem>>, %arg15: memref<1x8x2xf32, #tpu.memory_space<vmem>>) attributes {dimension_semantics = [#tpu.dimension_semantics<parallel>, #tpu.dimension_semantics<parallel>], iteration_bounds = array<i64: 2, 1>, scalar_prefetch = 0 : i64, scratch_operands = 0 : i64, tpu.core_type = #tpu.core_type<tc>, window_params = [{transform_indices = @transform_0, window_bounds = array<i64: 1, 8, 36>}, {transform_indices = @transform_1, window_bounds = array<i64: 1, 1, 32>}, {pipeline_mode = #tpu.pipeline_mode<synchronous>, transform_indices = @transform_2, window_bounds = array<i64: 36, 32>}, {pipeline_mode = #tpu.pipeline_mode<synchronous>, transform_indices = @transform_3, window_bounds = array<i64: 32, 32>}, {pipeline_mode = #tpu.pipeline_mode<synchronous>, transform_indices = @transform_4, window_bounds = array<i64: 1, 32>}, {pipeline_mode = #tpu.pipeline_mode<synchronous>, transform_indices = @transform_5, window_bounds = array<i64: 32, 32>}, {pipeline_mode = #tpu.pipeline_mode<synchronous>, transform_indices = @transform_6, window_bounds = array<i64: 1, 32>}, {pipeline_mode = #tpu.pipeline_mode<synchronous>, transform_indices = @transform_7, window_bounds = array<i64: 32, 32>}, {pipeline_mode = #tpu.pipeline_mode<synchronous>, transform_indices = @transform_8, window_bounds = array<i64: 1, 32>}, {pipeline_mode = #tpu.pipeline_mode<synchronous>, transform_indices = @transform_9, window_bounds = array<i64: 32, 32>}, {pipeline_mode = #tpu.pipeline_mode<synchronous>, transform_indices = @transform_10, window_bounds = array<i64: 1, 32>}, {pipeline_mode = #tpu.pipeline_mode<synchronous>, transform_indices = @transform_11, window_bounds = array<i64: 32, 2>}, {pipeline_mode = #tpu.pipeline_mode<synchronous>, transform_indices = @transform_12, window_bounds = array<i64: 1, 2>}, {transform_indices = @transform_13, window_bounds = array<i64: 1, 8, 2>}]} {
    %c0 = arith.constant 0 : index
    %c0_0 = arith.constant 0 : index
    %c0_1 = arith.constant 0 : index
    %0 = vector.load %arg2[%c0, %c0_0, %c0_1] : memref<1x8x36xbf16, #tpu.memory_space<vmem>>, vector<1x8x36xbf16>
    %1 = vector.shape_cast %0 : vector<1x8x36xbf16> to vector<8x36xbf16>
    %c0_2 = arith.constant 0 : index
    %c0_3 = arith.constant 0 : index
    %2 = vector.load %arg4[%c0_2, %c0_3] : memref<36x32xbf16, #tpu.memory_space<vmem>>, vector<36x32xbf16>
    %cst = arith.constant dense<0.000000e+00> : vector<8x32xf32>
    %3 = tpu.matmul %1, %2, %cst {dimension_numbers = #tpu.dot_dimension_numbers<[1], [0], [0], [1], [0, 0, 1, 1], [], []>} : vector<8x36xbf16>, vector<36x32xbf16>, vector<8x32xf32> -> vector<8x32xf32>
    %c0_4 = arith.constant 0 : index
    %c0_5 = arith.constant 0 : index
    %c0_6 = arith.constant 0 : index
    %4 = vector.load %arg3[%c0_4, %c0_5, %c0_6] : memref<1x1x32xbf16, #tpu.memory_space<vmem>>, vector<1x1x32xbf16>
    %5 = vector.shape_cast %4 : vector<1x1x32xbf16> to vector<1x32xbf16>
    %c0_7 = arith.constant 0 : index
    %c0_8 = arith.constant 0 : index
    %6 = vector.load %arg5[%c0_7, %c0_8] : memref<32x32xbf16, #tpu.memory_space<vmem>>, vector<32x32xbf16>
    %cst_9 = arith.constant dense<0.000000e+00> : vector<1x32xf32>
    %7 = tpu.matmul %5, %6, %cst_9 {dimension_numbers = #tpu.dot_dimension_numbers<[1], [0], [0], [1], [0, 0, 1, 1], [], []>} : vector<1x32xbf16>, vector<32x32xbf16>, vector<1x32xf32> -> vector<1x32xf32>
    %8 = vector.broadcast %7 : vector<1x32xf32> to vector<8x32xf32>
    %9 = arith.addf %3, %8 : vector<8x32xf32>
    %c0_10 = arith.constant 0 : index
    %c0_11 = arith.constant 0 : index
    %10 = vector.load %arg6[%c0_10, %c0_11] : memref<1x32xf32, #tpu.memory_space<vmem>>, vector<1x32xf32>
    %11 = vector.broadcast %10 : vector<1x32xf32> to vector<8x32xf32>
    %12 = arith.addf %9, %11 : vector<8x32xf32>
    %cst_12 = arith.constant 0.000000e+00 : f32
    %13 = vector.broadcast %cst_12 : f32 to vector<8x32xf32>
    %14 = arith.maximumf %12, %13 : vector<8x32xf32>
    %15 = arith.truncf %14 : vector<8x32xf32> to vector<8x32xbf16>
    %c0_13 = arith.constant 0 : index
    %c0_14 = arith.constant 0 : index
    %16 = vector.load %arg7[%c0_13, %c0_14] : memref<32x32xbf16, #tpu.memory_space<vmem>>, vector<32x32xbf16>
    %cst_15 = arith.constant dense<0.000000e+00> : vector<8x32xf32>
    %17 = tpu.matmul %15, %16, %cst_15 {dimension_numbers = #tpu.dot_dimension_numbers<[1], [0], [0], [1], [0, 0, 1, 1], [], []>} : vector<8x32xbf16>, vector<32x32xbf16>, vector<8x32xf32> -> vector<8x32xf32>
    %c0_16 = arith.constant 0 : index
    %c0_17 = arith.constant 0 : index
    %18 = vector.load %arg8[%c0_16, %c0_17] : memref<1x32xf32, #tpu.memory_space<vmem>>, vector<1x32xf32>
    %19 = vector.broadcast %18 : vector<1x32xf32> to vector<8x32xf32>
    %20 = arith.addf %17, %19 : vector<8x32xf32>
    %cst_18 = arith.constant 0.000000e+00 : f32
    %21 = vector.broadcast %cst_18 : f32 to vector<8x32xf32>
    %22 = arith.maximumf %20, %21 : vector<8x32xf32>
    %23 = arith.truncf %22 : vector<8x32xf32> to vector<8x32xbf16>
    %c0_19 = arith.constant 0 : index
    %c0_20 = arith.constant 0 : index
    %24 = vector.load %arg9[%c0_19, %c0_20] : memref<32x32xbf16, #tpu.memory_space<vmem>>, vector<32x32xbf16>
    %cst_21 = arith.constant dense<0.000000e+00> : vector<8x32xf32>
    %25 = tpu.matmul %23, %24, %cst_21 {dimension_numbers = #tpu.dot_dimension_numbers<[1], [0], [0], [1], [0, 0, 1, 1], [], []>} : vector<8x32xbf16>, vector<32x32xbf16>, vector<8x32xf32> -> vector<8x32xf32>
    %c0_22 = arith.constant 0 : index
    %c0_23 = arith.constant 0 : index
    %26 = vector.load %arg10[%c0_22, %c0_23] : memref<1x32xf32, #tpu.memory_space<vmem>>, vector<1x32xf32>
    %27 = vector.broadcast %26 : vector<1x32xf32> to vector<8x32xf32>
    %28 = arith.addf %25, %27 : vector<8x32xf32>
    %cst_24 = arith.constant 0.000000e+00 : f32
    %29 = vector.broadcast %cst_24 : f32 to vector<8x32xf32>
    %30 = arith.maximumf %28, %29 : vector<8x32xf32>
    %31 = arith.truncf %30 : vector<8x32xf32> to vector<8x32xbf16>
    %c0_25 = arith.constant 0 : index
    %c0_26 = arith.constant 0 : index
    %32 = vector.load %arg11[%c0_25, %c0_26] : memref<32x32xbf16, #tpu.memory_space<vmem>>, vector<32x32xbf16>
    %cst_27 = arith.constant dense<0.000000e+00> : vector<8x32xf32>
    %33 = tpu.matmul %31, %32, %cst_27 {dimension_numbers = #tpu.dot_dimension_numbers<[1], [0], [0], [1], [0, 0, 1, 1], [], []>} : vector<8x32xbf16>, vector<32x32xbf16>, vector<8x32xf32> -> vector<8x32xf32>
    %c0_28 = arith.constant 0 : index
    %c0_29 = arith.constant 0 : index
    %34 = vector.load %arg12[%c0_28, %c0_29] : memref<1x32xf32, #tpu.memory_space<vmem>>, vector<1x32xf32>
    %35 = vector.broadcast %34 : vector<1x32xf32> to vector<8x32xf32>
    %36 = arith.addf %33, %35 : vector<8x32xf32>
    %cst_30 = arith.constant 0.000000e+00 : f32
    %37 = vector.broadcast %cst_30 : f32 to vector<8x32xf32>
    %38 = arith.maximumf %36, %37 : vector<8x32xf32>
    %39 = arith.truncf %38 : vector<8x32xf32> to vector<8x32xbf16>
    %c0_31 = arith.constant 0 : index
    %c0_32 = arith.constant 0 : index
    %40 = vector.load %arg13[%c0_31, %c0_32] : memref<32x2xbf16, #tpu.memory_space<vmem>>, vector<32x2xbf16>
    %cst_33 = arith.constant dense<0.000000e+00> : vector<8x2xf32>
    %41 = tpu.matmul %39, %40, %cst_33 {dimension_numbers = #tpu.dot_dimension_numbers<[1], [0], [0], [1], [0, 0, 1, 1], [], []>} : vector<8x32xbf16>, vector<32x2xbf16>, vector<8x2xf32> -> vector<8x2xf32>
    %c0_34 = arith.constant 0 : index
    %c0_35 = arith.constant 0 : index
    %42 = vector.load %arg14[%c0_34, %c0_35] : memref<1x2xf32, #tpu.memory_space<vmem>>, vector<1x2xf32>
    %43 = vector.broadcast %42 : vector<1x2xf32> to vector<8x2xf32>
    %44 = arith.addf %41, %43 : vector<8x2xf32>
    %45 = tpu.iota {dimensions = array<i32: 1>} : vector<8x2xi32>
    %cst_36 = arith.constant 0.000000e+00 : f32
    %46 = vector.broadcast %cst_36 : f32 to vector<8x2xf32>
    %47 = arith.maximumf %44, %46 : vector<8x2xf32>
    %48 = math.absf %44 : vector<8x2xf32>
    %cst_37 = arith.constant 0.000000e+00 : f32
    %49 = vector.broadcast %cst_37 : f32 to vector<8x2xf32>
    %50 = arith.subf %49, %48 : vector<8x2xf32>
    %51 = math.exp %50 : vector<8x2xf32>
    %52 = math.log1p %51 : vector<8x2xf32>
    %53 = arith.addf %47, %52 : vector<8x2xf32>
    %cst_38 = arith.constant 0.899999976 : f32
    %54 = vector.broadcast %cst_38 : f32 to vector<8x2xf32>
    %55 = arith.mulf %54, %53 : vector<8x2xf32>
    %cst_39 = arith.constant 1.000000e-01 : f32
    %56 = vector.broadcast %cst_39 : f32 to vector<8x2xf32>
    %57 = arith.addf %56, %55 : vector<8x2xf32>
    %c1_i32 = arith.constant 1 : i32
    %58 = vector.broadcast %c1_i32 : i32 to vector<8x2xi32>
    %59 = arith.cmpi sge, %45, %58 : vector<8x2xi32>
    %60 = arith.select %59, %57, %44 : vector<8x2xi1>, vector<8x2xf32>
    %c0_40 = arith.constant 0 : index
    %c0_41 = arith.constant 0 : index
    %c0_42 = arith.constant 0 : index
    %61 = vector.load %arg15[%c0_40, %c0_41, %c0_42] : memref<1x8x2xf32, #tpu.memory_space<vmem>>, vector<1x8x2xf32>
    %62 = vector.shape_cast %61 : vector<1x8x2xf32> to vector<8x2xf32>
    %63 = vector.shape_cast %60 : vector<8x2xf32> to vector<1x8x2xf32>
    tpu.vector_store %arg15[%c0_40, %c0_41, %c0_42], %63 {strides = array<i32>} : memref<1x8x2xf32, #tpu.memory_space<vmem>>, vector<1x8x2xf32>,
    return
  }
  func.func @transform_0(%arg0: i32, %arg1: i32) -> (i32, i32, i32) {
    %c0_i32 = arith.constant 0 : i32
    %c0_i32_0 = arith.constant 0 : i32
    return %arg0, %arg1, %c0_i32 : i32, i32, i32
  }
  func.func @transform_1(%arg0: i32, %arg1: i32) -> (i32, i32, i32) {
    %c0_i32 = arith.constant 0 : i32
    %c0_i32_0 = arith.constant 0 : i32
    %c0_i32_1 = arith.constant 0 : i32
    return %arg0, %c0_i32, %c0_i32_0 : i32, i32, i32
  }
  func.func @transform_2(%arg0: i32, %arg1: i32) -> (i32, i32) {
    %c0_i32 = arith.constant 0 : i32
    %c0_i32_0 = arith.constant 0 : i32
    %c0_i32_1 = arith.constant 0 : i32
    return %c0_i32, %c0_i32_0 : i32, i32
  }
  func.func @transform_3(%arg0: i32, %arg1: i32) -> (i32, i32) {
    %c0_i32 = arith.constant 0 : i32
    %c0_i32_0 = arith.constant 0 : i32
    %c0_i32_1 = arith.constant 0 : i32
    return %c0_i32, %c0_i32_0 : i32, i32
  }
  func.func @transform_4(%arg0: i32, %arg1: i32) -> (i32, i32) {
    %c0_i32 = arith.constant 0 : i32
    %c0_i32_0 = arith.constant 0 : i32
    %c0_i32_1 = arith.constant 0 : i32
    return %c0_i32, %c0_i32_0 : i32, i32
  }
  func.func @transform_5(%arg0: i32, %arg1: i32) -> (i32, i32) {
    %c0_i32 = arith.constant 0 : i32
    %c0_i32_0 = arith.constant 0 : i32
    %c0_i32_1 = arith.constant 0 : i32
    return %c0_i32, %c0_i32_0 : i32, i32
  }
  func.func @transform_6(%arg0: i32, %arg1: i32) -> (i32, i32) {
    %c0_i32 = arith.constant 0 : i32
    %c0_i32_0 = arith.constant 0 : i32
    %c0_i32_1 = arith.constant 0 : i32
    return %c0_i32, %c0_i32_0 : i32, i32
  }
  func.func @transform_7(%arg0: i32, %arg1: i32) -> (i32, i32) {
    %c0_i32 = arith.constant 0 : i32
    %c0_i32_0 = arith.constant 0 : i32
    %c0_i32_1 = arith.constant 0 : i32
    return %c0_i32, %c0_i32_0 : i32, i32
  }
  func.func @transform_8(%arg0: i32, %arg1: i32) -> (i32, i32) {
    %c0_i32 = arith.constant 0 : i32
    %c0_i32_0 = arith.constant 0 : i32
    %c0_i32_1 = arith.constant 0 : i32
    return %c0_i32, %c0_i32_0 : i32, i32
  }
  func.func @transform_9(%arg0: i32, %arg1: i32) -> (i32, i32) {
    %c0_i32 = arith.constant 0 : i32
    %c0_i32_0 = arith.constant 0 : i32
    %c0_i32_1 = arith.constant 0 : i32
    return %c0_i32, %c0_i32_0 : i32, i32
  }
  func.func @transform_10(%arg0: i32, %arg1: i32) -> (i32, i32) {
    %c0_i32 = arith.constant 0 : i32
    %c0_i32_0 = arith.constant 0 : i32
    %c0_i32_1 = arith.constant 0 : i32
    return %c0_i32, %c0_i32_0 : i32, i32
  }
  func.func @transform_11(%arg0: i32, %arg1: i32) -> (i32, i32) {
    %c0_i32 = arith.constant 0 : i32
    %c0_i32_0 = arith.constant 0 : i32
    %c0_i32_1 = arith.constant 0 : i32
    return %c0_i32, %c0_i32_0 : i32, i32
  }
  func.func @transform_12(%arg0: i32, %arg1: i32) -> (i32, i32) {
    %c0_i32 = arith.constant 0 : i32
    %c0_i32_0 = arith.constant 0 : i32
    %c0_i32_1 = arith.constant 0 : i32
    return %c0_i32, %c0_i32_0 : i32, i32
  }
  func.func @transform_13(%arg0: i32, %arg1: i32) -> (i32, i32, i32) {
    %c0_i32 = arith.constant 0 : i32
    %c0_i32_0 = arith.constant 0 : i32
    return %arg0, %arg1, %c0_i32 : i32, i32, i32
  }
}

</mosaic_0001>

<llo_original>
// kernel: decoder_forward.1
$region0: #{decoder_forward.1}
  #allocation0 [shape = 'u32[]', space=smem, size = 0x4, offset = 0x4, fixed_abs, tag = 'smem constant byte address 0x4 - core index']
  #allocation1 [shape = 'u32[72,128]{1,0:T(1,128)}', space=vmem, size = 0x9000, scoped, tag = 'internal scratch']
  %s0 = inlined_call_operand.vmem [shape: bf16[2,8,36], index: 0, kind: input, shape index: {}]
  %s1 = inlined_call_operand.vmem [shape: bf16[2,1,32], index: 1, kind: input, shape index: {}]
  %s2 = inlined_call_operand.vmem [shape: bf16[36,32], index: 2, kind: input, shape index: {}]
  %s3 = inlined_call_operand.vmem [shape: bf16[32,32], index: 3, kind: input, shape index: {}]
  %s4 = inlined_call_operand.vmem [shape: f32[1,32], index: 4, kind: input, shape index: {}]
  %s5 = inlined_call_operand.vmem [shape: bf16[32,32], index: 5, kind: input, shape index: {}]
  %s6 = inlined_call_operand.vmem [shape: f32[1,32], index: 6, kind: input, shape index: {}]
  %s7 = inlined_call_operand.vmem [shape: bf16[32,32], index: 7, kind: input, shape index: {}]
  %s8 = inlined_call_operand.vmem [shape: f32[1,32], index: 8, kind: input, shape index: {}]
  %s9 = inlined_call_operand.vmem [shape: bf16[32,32], index: 9, kind: input, shape index: {}]
  %s10 = inlined_call_operand.vmem [shape: f32[1,32], index: 10, kind: input, shape index: {}]
  %s11 = inlined_call_operand.vmem [shape: bf16[32,2], index: 11, kind: input, shape index: {}]
  %s12 = inlined_call_operand.vmem [shape: f32[1,2], index: 12, kind: input, shape index: {}]
  %s13 = inlined_call_operand.vmem [shape: f32[2,8,2], index: 13, kind: output, shape index: {}]
  %s14 = sld [smem:[#allocation0]]
  $region85: #{decoder_forward.1} parent=0
    _
  %s16 = ssub.s32 1, %s14
  %s17 = scalar_select 0, %s16, %s14
  loop: start=0, step=1, limit=4
  $region2: #{decoder_forward.1} parent=0 // loop_pre_header
    _
  $region3: #{decoder_forward.1} parent=0 // loop_header
    %s19 = sphi 0, %s23
    %p20 = scmp.ge.s32.totalorder %s19, 4
    %s26 = sphi 0, %s38
    %s27 = sphi 0, %s34
    %s28 = sphi 0, %s26
    %s29 = sphi 0, %s27
    %s30 = sphi 0, %s28
    %s31 = sphi 0, %s29
    %s43 = sphi 0, %s45
    %s46 = sphi 0, %s43
    %s47 = sphi 0, %s46
    %s63 = sphi 0, %s47
    %s69 = sphi 0, %s71
    %s72 = sphi 0, %s69
    %s73 = sphi 0, %s72
    %s89 = sphi 0, %s73
    %s93 = sphi 0, %s93
    %s95 = sphi 0, %s93
    %s96 = sphi 0, %s95
    %s110 = sphi 0, %s96
    %s114 = sphi 0, %s114
    %s116 = sphi 0, %s114
    %s117 = sphi 0, %s116
    %s131 = sphi 0, %s117
    %s135 = sphi 0, %s135
    %s137 = sphi 0, %s135
    %s138 = sphi 0, %s137
    %s152 = sphi 0, %s138
    %s156 = sphi 0, %s156
    %s158 = sphi 0, %s156
    %s159 = sphi 0, %s158
    %s173 = sphi 0, %s159
    %s177 = sphi 0, %s177
    %s179 = sphi 0, %s177
    %s180 = sphi 0, %s179
    %s194 = sphi 0, %s180
    %s198 = sphi 0, %s198
    %s200 = sphi 0, %s198
    %s201 = sphi 0, %s200
    %s215 = sphi 0, %s201
    %s219 = sphi 0, %s219
    %s221 = sphi 0, %s219
    %s222 = sphi 0, %s221
    %s236 = sphi 0, %s222
    %s240 = sphi 0, %s240
    %s242 = sphi 0, %s240
    %s243 = sphi 0, %s242
    %s257 = sphi 0, %s243
    %s261 = sphi 0, %s261
    %s263 = sphi 0, %s261
    %s264 = sphi 0, %s263
    %s278 = sphi 0, %s264
    %s282 = sphi 0, %s282
    %s284 = sphi 0, %s282
    %s285 = sphi 0, %s284
    %s299 = sphi 0, %s285
    %s303 = sphi 0, %s303
    %s305 = sphi 0, %s303
    %s306 = sphi 0, %s305
    %s320 = sphi 0, %s306
    %s328 = sphi 0, %s330
    %s331 = sphi 0, %s328
    %s332 = sphi 0, %s331
    %s348 = sphi 0, %s332
  $region4: #{decoder_forward.1} parent=0 // loop_header_branch
    %22 = sbr.rel (%p20) target = $region8
  $region5: #{decoder_forward.1} parent=0 // loop_body
    %s24 = ssub.s32 %s19, 1
    %s25 = ssub.s32 %s19, 2
    %s32 = sadd.s32 1, %s27
    %p33 = scmp.ge.s32.totalorder %s32, 1
    %s34 = scalar_select %p33, 0, %s32
    %s35 = sadd.s32 1, %s26
    %s36 = scalar_select %p33, %s35, %s26
    %p37 = scmp.ge.s32.totalorder %s36, 2
    %s38 = scalar_select %p37, 0, %s36
    %s39 = ssub.s32 %s26, %s38
    %s40 = ssub.s32 %s27, %s34
    %s41 = sor.u32 %s39, %s40
    %p42 = scmp.eq.s32.totalorder %s41, 0
    %s44 = sadd.s32 %s43, 1
    %s45 = scalar_select %p42, %s43, %s44
    %p48 = pneg %p42
    %p49 = scmp.eq.s32.totalorder %s19, 1
    %p50 = por %p48, %p49
    %p51 = scmp.ne.s32.totalorder %s43, %s46
    %p52 = scmp.eq.s32.totalorder %s19, 0
    %p53 = por %p51, %p52
    %p54 = scmp.ne.s32.totalorder %s43, %s46
    %p55 = scmp.eq.s32.totalorder %s24, 1
    %p56 = por %p54, %p55
    %p57 = scmp.ne.s32.totalorder %s46, %s47
    %p58 = scmp.eq.s32.totalorder %s24, 0
    %p59 = por %p57, %p58
    %p60 = scmp.ne.s32.totalorder %s46, %s47
    %p61 = scmp.eq.s32.totalorder %s25, 1
    %p62 = por %p60, %p61
    %p64 = scmp.ne.s32.totalorder %s47, %s63
    %p65 = scmp.eq.s32.totalorder %s25, 0
    %p66 = por %p64, %p65
    %s67 = ssub.s32 %s26, %s38
    %p68 = scmp.eq.s32.totalorder %s67, 0
    %s70 = sadd.s32 %s69, 1
    %s71 = scalar_select %p68, %s69, %s70
    %p74 = pneg %p68
    %p75 = scmp.eq.s32.totalorder %s19, 1
    %p76 = por %p74, %p75
    %p77 = scmp.ne.s32.totalorder %s69, %s72
    %p78 = scmp.eq.s32.totalorder %s19, 0
    %p79 = por %p77, %p78
    %p80 = scmp.ne.s32.totalorder %s69, %s72
    %p81 = scmp.eq.s32.totalorder %s24, 1
    %p82 = por %p80, %p81
    %p83 = scmp.ne.s32.totalorder %s72, %s73
    %p84 = scmp.eq.s32.totalorder %s24, 0
    %p85 = por %p83, %p84
    %p86 = scmp.ne.s32.totalorder %s72, %s73
    %p87 = scmp.eq.s32.totalorder %s25, 1
    %p88 = por %p86, %p87
    %p90 = scmp.ne.s32.totalorder %s73, %s89
    %p91 = scmp.eq.s32.totalorder %s25, 0
    %p92 = por %p90, %p91
    %s94 = sadd.s32 %s93, 1
    %p97 = scmp.eq.s32.totalorder %s19, 1
    %p98 = scmp.ne.s32.totalorder %s93, %s95
    %p99 = scmp.eq.s32.totalorder %s19, 0
    %p100 = por %p98, %p99
    %p101 = scmp.ne.s32.totalorder %s93, %s95
    %p102 = scmp.eq.s32.totalorder %s24, 1
    %p103 = por %p101, %p102
    %p104 = scmp.ne.s32.totalorder %s95, %s96
    %p105 = scmp.eq.s32.totalorder %s24, 0
    %p106 = por %p104, %p105
    %p107 = scmp.ne.s32.totalorder %s95, %s96
    %p108 = scmp.eq.s32.totalorder %s25, 1
    %p109 = por %p107, %p108
    %p111 = scmp.ne.s32.totalorder %s96, %s110
    %p112 = scmp.eq.s32.totalorder %s25, 0
    %p113 = por %p111, %p112
    %s115 = sadd.s32 %s114, 1
    %p118 = scmp.eq.s32.totalorder %s19, 1
    %p119 = scmp.ne.s32.totalorder %s114, %s116
    %p120 = scmp.eq.s32.totalorder %s19, 0
    %p121 = por %p119, %p120
    %p122 = scmp.ne.s32.totalorder %s114, %s116
    %p123 = scmp.eq.s32.totalorder %s24, 1
    %p124 = por %p122, %p123
    %p125 = scmp.ne.s32.totalorder %s116, %s117
    %p126 = scmp.eq.s32.totalorder %s24, 0
    %p127 = por %p125, %p126
    %p128 = scmp.ne.s32.totalorder %s116, %s117
    %p129 = scmp.eq.s32.totalorder %s25, 1
    %p130 = por %p128, %p129
    %p132 = scmp.ne.s32.totalorder %s117, %s131
    %p133 = scmp.eq.s32.totalorder %s25, 0
    %p134 = por %p132, %p133
    %s136 = sadd.s32 %s135, 1
    %p139 = scmp.eq.s32.totalorder %s19, 1
    %p140 = scmp.ne.s32.totalorder %s135, %s137
    %p141 = scmp.eq.s32.totalorder %s19, 0
    %p142 = por %p140, %p141
    %p143 = scmp.ne.s32.totalorder %s135, %s137
    %p144 = scmp.eq.s32.totalorder %s24, 1
    %p145 = por %p143, %p144
    %p146 = scmp.ne.s32.totalorder %s137, %s138
    %p147 = scmp.eq.s32.totalorder %s24, 0
    %p148 = por %p146, %p147
    %p149 = scmp.ne.s32.totalorder %s137, %s138
    %p150 = scmp.eq.s32.totalorder %s25, 1
    %p151 = por %p149, %p150
    %p153 = scmp.ne.s32.totalorder %s138, %s152
    %p154 = scmp.eq.s32.totalorder %s25, 0
    %p155 = por %p153, %p154
    %s157 = sadd.s32 %s156, 1
    %p160 = scmp.eq.s32.totalorder %s19, 1
    %p161 = scmp.ne.s32.totalorder %s156, %s158
    %p162 = scmp.eq.s32.totalorder %s19, 0
    %p163 = por %p161, %p162
    %p164 = scmp.ne.s32.totalorder %s156, %s158
    %p165 = scmp.eq.s32.totalorder %s24, 1
    %p166 = por %p164, %p165
    %p167 = scmp.ne.s32.totalorder %s158, %s159
    %p168 = scmp.eq.s32.totalorder %s24, 0
    %p169 = por %p167, %p168
    %p170 = scmp.ne.s32.totalorder %s158, %s159
    %p171 = scmp.eq.s32.totalorder %s25, 1
    %p172 = por %p170, %p171
    %p174 = scmp.ne.s32.totalorder %s159, %s173
    %p175 = scmp.eq.s32.totalorder %s25, 0
    %p176 = por %p174, %p175
    %s178 = sadd.s32 %s177, 1
    %p181 = scmp.eq.s32.totalorder %s19, 1
    %p182 = scmp.ne.s32.totalorder %s177, %s179
    %p183 = scmp.eq.s32.totalorder %s19, 0
    %p184 = por %p182, %p183
    %p185 = scmp.ne.s32.totalorder %s177, %s179
    %p186 = scmp.eq.s32.totalorder %s24, 1
    %p187 = por %p185, %p186
    %p188 = scmp.ne.s32.totalorder %s179, %s180
    %p189 = scmp.eq.s32.totalorder %s24, 0
    %p190 = por %p188, %p189
    %p191 = scmp.ne.s32.totalorder %s179, %s180
    %p192 = scmp.eq.s32.totalorder %s25, 1
    %p193 = por %p191, %p192
    %p195 = scmp.ne.s32.totalorder %s180, %s194
    %p196 = scmp.eq.s32.totalorder %s25, 0
    %p197 = por %p195, %p196
    %s199 = sadd.s32 %s198, 1
    %p202 = scmp.eq.s32.totalorder %s19, 1
    %p203 = scmp.ne.s32.totalorder %s198, %s200
    %p204 = scmp.eq.s32.totalorder %s19, 0
    %p205 = por %p203, %p204
    %p206 = scmp.ne.s32.totalorder %s198, %s200
    %p207 = scmp.eq.s32.totalorder %s24, 1
    %p208 = por %p206, %p207
    %p209 = scmp.ne.s32.totalorder %s200, %s201
    %p210 = scmp.eq.s32.totalorder %s24, 0
    %p211 = por %p209, %p210
    %p212 = scmp.ne.s32.totalorder %s200, %s201
    %p213 = scmp.eq.s32.totalorder %s25, 1
    %p214 = por %p212, %p213
    %p216 = scmp.ne.s32.totalorder %s201, %s215
    %p217 = scmp.eq.s32.totalorder %s25, 0
    %p218 = por %p216, %p217
    %s220 = sadd.s32 %s219, 1
    %p223 = scmp.eq.s32.totalorder %s19, 1
    %p224 = scmp.ne.s32.totalorder %s219, %s221
    %p225 = scmp.eq.s32.totalorder %s19, 0
    %p226 = por %p224, %p225
    %p227 = scmp.ne.s32.totalorder %s219, %s221
    %p228 = scmp.eq.s32.totalorder %s24, 1
    %p229 = por %p227, %p228
    %p230 = scmp.ne.s32.totalorder %s221, %s222
    %p231 = scmp.eq.s32.totalorder %s24, 0
    %p232 = por %p230, %p231
    %p233 = scmp.ne.s32.totalorder %s221, %s222
    %p234 = scmp.eq.s32.totalorder %s25, 1
    %p235 = por %p233, %p234
    %p237 = scmp.ne.s32.totalorder %s222, %s236
    %p238 = scmp.eq.s32.totalorder %s25, 0
    %p239 = por %p237, %p238
    %s241 = sadd.s32 %s240, 1
    %p244 = scmp.eq.s32.totalorder %s19, 1
    %p245 = scmp.ne.s32.totalorder %s240, %s242
    %p246 = scmp.eq.s32.totalorder %s19, 0
    %p247 = por %p245, %p246
    %p248 = scmp.ne.s32.totalorder %s240, %s242
    %p249 = scmp.eq.s32.totalorder %s24, 1
    %p250 = por %p248, %p249
    %p251 = scmp.ne.s32.totalorder %s242, %s243
    %p252 = scmp.eq.s32.totalorder %s24, 0
    %p253 = por %p251, %p252
    %p254 = scmp.ne.s32.totalorder %s242, %s243
    %p255 = scmp.eq.s32.totalorder %s25, 1
    %p256 = por %p254, %p255
    %p258 = scmp.ne.s32.totalorder %s243, %s257
    %p259 = scmp.eq.s32.totalorder %s25, 0
    %p260 = por %p258, %p259
    %s262 = sadd.s32 %s261, 1
    %p265 = scmp.eq.s32.totalorder %s19, 1
    %p266 = scmp.ne.s32.totalorder %s261, %s263
    %p267 = scmp.eq.s32.totalorder %s19, 0
    %p268 = por %p266, %p267
    %p269 = scmp.ne.s32.totalorder %s261, %s263
    %p270 = scmp.eq.s32.totalorder %s24, 1
    %p271 = por %p269, %p270
    %p272 = scmp.ne.s32.totalorder %s263, %s264
    %p273 = scmp.eq.s32.totalorder %s24, 0
    %p274 = por %p272, %p273
    %p275 = scmp.ne.s32.totalorder %s263, %s264
    %p276 = scmp.eq.s32.totalorder %s25, 1
    %p277 = por %p275, %p276
    %p279 = scmp.ne.s32.totalorder %s264, %s278
    %p280 = scmp.eq.s32.totalorder %s25, 0
    %p281 = por %p279, %p280
    %s283 = sadd.s32 %s282, 1
    %p286 = scmp.eq.s32.totalorder %s19, 1
    %p287 = scmp.ne.s32.totalorder %s282, %s284
    %p288 = scmp.eq.s32.totalorder %s19, 0
    %p289 = por %p287, %p288
    %p290 = scmp.ne.s32.totalorder %s282, %s284
    %p291 = scmp.eq.s32.totalorder %s24, 1
    %p292 = por %p290, %p291
    %p293 = scmp.ne.s32.totalorder %s284, %s285
    %p294 = scmp.eq.s32.totalorder %s24, 0
    %p295 = por %p293, %p294
    %p296 = scmp.ne.s32.totalorder %s284, %s285
    %p297 = scmp.eq.s32.totalorder %s25, 1
    %p298 = por %p296, %p297
    %p300 = scmp.ne.s32.totalorder %s285, %s299
    %p301 = scmp.eq.s32.totalorder %s25, 0
    %p302 = por %p300, %p301
    %s304 = sadd.s32 %s303, 1
    %p307 = scmp.eq.s32.totalorder %s19, 1
    %p308 = scmp.ne.s32.totalorder %s303, %s305
    %p309 = scmp.eq.s32.totalorder %s19, 0
    %p310 = por %p308, %p309
    %p311 = scmp.ne.s32.totalorder %s303, %s305
    %p312 = scmp.eq.s32.totalorder %s24, 1
    %p313 = por %p311, %p312
    %p314 = scmp.ne.s32.totalorder %s305, %s306
    %p315 = scmp.eq.s32.totalorder %s24, 0
    %p316 = por %p314, %p315
    %p317 = scmp.ne.s32.totalorder %s305, %s306
    %p318 = scmp.eq.s32.totalorder %s25, 1
    %p319 = por %p317, %p318
    %p321 = scmp.ne.s32.totalorder %s306, %s320
    %p322 = scmp.eq.s32.totalorder %s25, 0
    %p323 = por %p321, %p322
    %s324 = ssub.s32 %s26, %s38
    %s325 = ssub.s32 %s27, %s34
    %s326 = sor.u32 %s324, %s325
    %p327 = scmp.eq.s32.totalorder %s326, 0
    %s329 = sadd.s32 %s328, 1
    %s330 = scalar_select %p327, %s328, %s329
    %p333 = pneg %p327
    %p334 = scmp.eq.s32.totalorder %s19, 1
    %p335 = por %p333, %p334
    %p336 = scmp.ne.s32.totalorder %s328, %s331
    %p337 = scmp.eq.s32.totalorder %s19, 0
    %p338 = por %p336, %p337
    %p339 = scmp.ne.s32.totalorder %s328, %s331
    %p340 = scmp.eq.s32.totalorder %s24, 1
    %p341 = por %p339, %p340
    %p342 = scmp.ne.s32.totalorder %s331, %s332
    %p343 = scmp.eq.s32.totalorder %s24, 0
    %p344 = por %p342, %p343
    %p345 = scmp.ne.s32.totalorder %s331, %s332
    %p346 = scmp.eq.s32.totalorder %s25, 1
    %p347 = por %p345, %p346
    %p349 = scmp.ne.s32.totalorder %s332, %s348
    %p350 = scmp.eq.s32.totalorder %s25, 0
    %p351 = por %p349, %p350
    %p352 = scmp.le.s32.totalorder 1, %s19
    %p353 = scmp.lt.s32.totalorder %s19, 3
    %p354 = pnand %p352, %p353
    %p355 = pneg %p354
    // Predicated region
    $region9: #{decoder_forward.1} parent=5 // pred_check
      _
    $region10: #{decoder_forward.1} parent=5 // pred_check_branch
      %357 = sbr.rel (%p354) target = $region12
    $region11: #{decoder_forward.1} parent=5 // pred_region
      %s358 = ssub.s32 %s19, 1
      // Predicated region
      $region13: #{decoder_forward.1} parent=11 // pred_check
        %p359 = pneg %p106
      $region14: #{decoder_forward.1} parent=11 // pred_check_branch
        %361 = sbr.rel (%p359) target = $region16
      $region15: #{decoder_forward.1} parent=11 // pred_region
        _
      $region16: #{decoder_forward.1} parent=11 // pred_fallthru
        _
      // Predicated region
      $region17: #{decoder_forward.1} parent=11 // pred_check
        %p362 = pneg %p127
      $region18: #{decoder_forward.1} parent=11 // pred_check_branch
        %364 = sbr.rel (%p362) target = $region20
      $region19: #{decoder_forward.1} parent=11 // pred_region
        _
      $region20: #{decoder_forward.1} parent=11 // pred_fallthru
        _
      // Predicated region
      $region21: #{decoder_forward.1} parent=11 // pred_check
        %p365 = pneg %p148
      $region22: #{decoder_forward.1} parent=11 // pred_check_branch
        %367 = sbr.rel (%p365) target = $region24
      $region23: #{decoder_forward.1} parent=11 // pred_region
        _
      $region24: #{decoder_forward.1} parent=11 // pred_fallthru
        _
      // Predicated region
      $region25: #{decoder_forward.1} parent=11 // pred_check
        %p368 = pneg %p169
      $region26: #{decoder_forward.1} parent=11 // pred_check_branch
        %370 = sbr.rel (%p368) target = $region28
      $region27: #{decoder_forward.1} parent=11 // pred_region
        _
      $region28: #{decoder_forward.1} parent=11 // pred_fallthru
        _
      // Predicated region
      $region29: #{decoder_forward.1} parent=11 // pred_check
        %p371 = pneg %p190
      $region30: #{decoder_forward.1} parent=11 // pred_check_branch
        %373 = sbr.rel (%p371) target = $region32
      $region31: #{decoder_forward.1} parent=11 // pred_region
        _
      $region32: #{decoder_forward.1} parent=11 // pred_fallthru
        _
      // Predicated region
      $region33: #{decoder_forward.1} parent=11 // pred_check
        %p374 = pneg %p211
      $region34: #{decoder_forward.1} parent=11 // pred_check_branch
        %376 = sbr.rel (%p374) target = $region36
      $region35: #{decoder_forward.1} parent=11 // pred_region
        _
      $region36: #{decoder_forward.1} parent=11 // pred_fallthru
        _
      // Predicated region
      $region37: #{decoder_forward.1} parent=11 // pred_check
        %p377 = pneg %p232
      $region38: #{decoder_forward.1} parent=11 // pred_check_branch
        %379 = sbr.rel (%p377) target = $region40
      $region39: #{decoder_forward.1} parent=11 // pred_region
        _
      $region40: #{decoder_forward.1} parent=11 // pred_fallthru
        _
      // Predicated region
      $region41: #{decoder_forward.1} parent=11 // pred_check
        %p380 = pneg %p253
      $region42: #{decoder_forward.1} parent=11 // pred_check_branch
        %382 = sbr.rel (%p380) target = $region44
      $region43: #{decoder_forward.1} parent=11 // pred_region
        _
      $region44: #{decoder_forward.1} parent=11 // pred_fallthru
        _
      // Predicated region
      $region45: #{decoder_forward.1} parent=11 // pred_check
        %p383 = pneg %p274
      $region46: #{decoder_forward.1} parent=11 // pred_check_branch
        %385 = sbr.rel (%p383) target = $region48
      $region47: #{decoder_forward.1} parent=11 // pred_region
        _
      $region48: #{decoder_forward.1} parent=11 // pred_fallthru
        _
      // Predicated region
      $region49: #{decoder_forward.1} parent=11 // pred_check
        %p386 = pneg %p295
      $region50: #{decoder_forward.1} parent=11 // pred_check_branch
        %388 = sbr.rel (%p386) target = $region52
      $region51: #{decoder_forward.1} parent=11 // pred_region
        _
      $region52: #{decoder_forward.1} parent=11 // pred_fallthru
        _
      // Predicated region
      $region53: #{decoder_forward.1} parent=11 // pred_check
        %p389 = pneg %p316
      $region54: #{decoder_forward.1} parent=11 // pred_check_branch
        %391 = sbr.rel (%p389) target = $region56
      $region55: #{decoder_forward.1} parent=11 // pred_region
        _
      $region56: #{decoder_forward.1} parent=11 // pred_fallthru
        _
    $region12: #{decoder_forward.1} parent=5 // pred_fallthru
      _
    %p392 = scmp.lt.s32.totalorder %s19, 2
    // Predicated region
    $region57: #{decoder_forward.1} parent=5 // pred_check
      %p393 = pneg %p392
    $region58: #{decoder_forward.1} parent=5 // pred_check_branch
      %395 = sbr.rel (%p393) target = $region60
    $region59: #{decoder_forward.1} parent=5 // pred_region
      // Predicated region
      $region61: #{decoder_forward.1} parent=59 // pred_check
        %p396 = pneg %p53
      $region62: #{decoder_forward.1} parent=59 // pred_check_branch
        %398 = sbr.rel (%p396) target = $region64
      $region63: #{decoder_forward.1} parent=59 // pred_region
        %p399 = scmp.lt.s32.totalorder %s26, 1
        %s400 = scalar_select %p399, %s26, 1
        %p401 = scmp.lt.s32.totalorder %s27, 0
        %s402 = scalar_select %p401, %s27, 0
        %s403 = sadd.s32 %s402, %s400
        %s404 = smul.addr %s403, 4
        %s405 = scalar_lea.vmem %s0, %s404
      $region64: #{decoder_forward.1} parent=59 // pred_fallthru
        _
      // Predicated region
      $region65: #{decoder_forward.1} parent=59 // pred_check
        %p406 = pneg %p79
      $region66: #{decoder_forward.1} parent=59 // pred_check_branch
        %408 = sbr.rel (%p406) target = $region68
      $region67: #{decoder_forward.1} parent=59 // pred_region
        %p409 = scmp.lt.s32.totalorder %s26, 1
        %s410 = scalar_select %p409, %s26, 1
        %s411 = scalar_lea.vmem %s1, %s410
      $region68: #{decoder_forward.1} parent=59 // pred_fallthru
        _
    $region60: #{decoder_forward.1} parent=5 // pred_fallthru
      _
    %p412 = scmp.le.s32.totalorder 1, %s19
    %p413 = scmp.lt.s32.totalorder %s19, 3
    %p414 = pnand %p412, %p413
    %p415 = pneg %p414
    // Predicated region
    $region69: #{decoder_forward.1} parent=5 // pred_check
      _
    $region70: #{decoder_forward.1} parent=5 // pred_check_branch
      %417 = sbr.rel (%p414) target = $region72
    $region71: #{decoder_forward.1} parent=5 // pred_region
      %s418 = ssub.s32 %s19, 1
      %p419 = scmp.lt.s32.totalorder %s28, 1
      %s420 = scalar_select %p419, %s28, 1
      %p421 = scmp.lt.s32.totalorder %s29, 0
      %s422 = scalar_select %p421, %s29, 0
      %s423 = sadd.s32 %s422, %s420
      %s424 = smul.addr %s423, 4
      %s425 = scalar_lea.vmem %s0, %s424
      %p426 = pneg %p59
      %p427 = pneg %p56
      %p428 = scmp.lt.s32.totalorder %s28, 1
      %s429 = scalar_select %p428, %s28, 1
      %s430 = scalar_lea.vmem %s1, %s429
      %p431 = pneg %p85
      %p432 = pneg %p82
      %p433 = pneg %p106
      %p434 = pneg %p103
      %p435 = pneg %p127
      %p436 = pneg %p124
      %p437 = pneg %p148
      %p438 = pneg %p145
      %p439 = pneg %p169
      %p440 = pneg %p166
      %p441 = pneg %p190
      %p442 = pneg %p187
      %p443 = pneg %p211
      %p444 = pneg %p208
      %p445 = pneg %p232
      %p446 = pneg %p229
      %p447 = pneg %p253
      %p448 = pneg %p250
      %p449 = pneg %p274
      %p450 = pneg %p271
      %p451 = pneg %p295
      %p452 = pneg %p292
      %p453 = pneg %p316
      %p454 = pneg %p313
      %p455 = pneg %p344
      %p456 = pneg %p341
      %p457 = scmp.lt.s32.totalorder %s28, 1
      %s458 = scalar_select %p457, %s28, 1
      %p459 = scmp.lt.s32.totalorder %s29, 0
      %s460 = scalar_select %p459, %s29, 0
      %s461 = sadd.s32 %s460, %s458
      %s462 = smul.addr %s461, 8
      %s463 = scalar_lea.vmem %s13, %s462
      %p464 = scmp.lt.s32.totalorder %s28, 1
      %s465 = scalar_select %p464, %s28, 1
      %p466 = scmp.lt.s32.totalorder %s29, 0
      %s467 = scalar_select %p466, %s29, 0
      %s468 = sadd.s32 %s467, %s465
      %s469 = smul.addr %s468, 4
      %s470 = scalar_lea.vmem %s0, %s469
      %p471 = scmp.lt.s32.totalorder %s28, 1
      %s472 = scalar_select %p471, %s28, 1
      %s473 = scalar_lea.vmem %s1, %s472
      %p474 = scmp.lt.s32.totalorder %s28, 1
      %s475 = scalar_select %p474, %s28, 1
      %p476 = scmp.lt.s32.totalorder %s29, 0
      %s477 = scalar_select %p476, %s29, 0
      %s478 = sadd.s32 %s477, %s475
      %s479 = smul.addr %s478, 8
      %s480 = scalar_lea.vmem %s13, %s479
      %v482 = vld [vmem:[%s470] sm:$0xf]
      %v483 = vld [vmem:[%s2] sm:$0xf]
      %v484 = vld [vmem:[%s2 + $0x4] sm:$0xf]
      %v485 = vld [vmem:[%s2 + $0x8] sm:$0xf]
      %v486 = vld [vmem:[%s2 + $0xc] sm:$0xf]
      %v487 = vld [vmem:[%s2 + $0x10] sm:$0x3]
      %v488 = vld [vmem:[%s473] sm:$0x1]
      %v489 = vld [vmem:[%s3] sm:$0xf]
      %v490 = vld [vmem:[%s3 + $0x4] sm:$0xf]
      %v491 = vld [vmem:[%s3 + $0x8] sm:$0xf]
      %v492 = vld [vmem:[%s3 + $0xc] sm:$0xf]
      %v497 = vunpack.c.l.b16 %v489
      %v498 = vunpack.c.l.b16 %v490
      %v499 = vunpack.c.l.b16 %v491
      %v500 = vunpack.c.l.b16 %v492
      %v501 = vpack.c.b16 %v498, %v497
      %v502 = vpack.c.b16 %v500, %v499
      %vm505 = vcmask 261120
      %v507 = vsel %vm505, %v488, 0
      %509 = vmatpush.bf16.msra.mxu0 0
      %510 = vmatpush.bf16.msra.mxu0 0
      %511 = vmatpush.bf16.msra.mxu0 0
      %512 = vmatpush.bf16.msra.mxu0 0
      %513 = vmatpush.bf16.msra.mxu0 0
      %514 = vmatpush.bf16.msra.mxu0 0
      %515 = vmatpush.bf16.msra.mxu0 %v502
      %516 = vmatpush.bf16.msra.mxu0 %v501
      %517 = vmatmul.bf16.gmra.mxu0 %v507
      %v518 = vpop.f32.mrf.mxu0
      %v519 = vadd.f32 0.0, %v518
      %v520 = vpop.f32.mrf.mxu0
      %521 = vdwg.mxu0
      %v522 = vperm.slane %v519, 0
      %v528 = vunpack.c.l.b16 %v483
      %v529 = vunpack.c.l.b16 %v484
      %v530 = vunpack.c.l.b16 %v485
      %v531 = vunpack.c.l.b16 %v486
      %v532 = vunpack.c.l.b16 %v487
      %v533 = vpack.c.b16 %v529, %v528
      %v534 = vpack.c.b16 %v531, %v530
      %v535 = vpack.c.b16 %v532, %v532
      %vm538 = vcmask 293888
      %v540 = vsel %vm538, %v482, 0
      %vm542 = vcmask 1041408
      %v544 = vsel %vm542, %v535, 0
      %546 = vmatpush.bf16.msra.mxu0 0
      %547 = vmatpush.bf16.msra.mxu0 0
      %548 = vmatpush.bf16.msra.mxu0 0
      %549 = vmatpush.bf16.msra.mxu0 0
      %550 = vmatpush.bf16.msra.mxu0 0
      %551 = vmatpush.bf16.msra.mxu0 %v544
      %552 = vmatpush.bf16.msra.mxu0 %v534
      %553 = vmatpush.bf16.msra.mxu0 %v533
      %554 = vmatmul.bf16.gmra.mxu0 %v540
      %v555 = vpop.f32.mrf.mxu0
      %v556 = vadd.f32 %v522, %v555
      %v557 = vpop.f32.mrf.mxu0
      %558 = vdwg.mxu0
      %v559 = vld [vmem:[%s4] sm:$0x1]
      %v561 = vperm.slane %v559, 0
      %v563 = vadd.f32 %v556, %v561
      %v564 = vmax.f32 %v563, 0.0
      %v565 = vpack.c.bf16 %v564, %v564
      %v566 = vld [vmem:[%s5] sm:$0xf]
      %v567 = vld [vmem:[%s5 + $0x4] sm:$0xf]
      %v568 = vld [vmem:[%s5 + $0x8] sm:$0xf]
      %v569 = vld [vmem:[%s5 + $0xc] sm:$0xf]
      %v570 = vld [vmem:[%s6] sm:$0x1]
      %v572 = vperm.slane %v570, 0
      %v578 = vunpack.c.l.b16 %v566
      %v579 = vunpack.c.l.b16 %v567
      %v580 = vunpack.c.l.b16 %v568
      %v581 = vunpack.c.l.b16 %v569
      %v582 = vpack.c.b16 %v579, %v578
      %v583 = vpack.c.b16 %v581, %v580
      %v587 = vsel %vm505, %v565, 0
      %589 = vmatpush.bf16.msra.mxu0 0
      %590 = vmatpush.bf16.msra.mxu0 0
      %591 = vmatpush.bf16.msra.mxu0 0
      %592 = vmatpush.bf16.msra.mxu0 0
      %593 = vmatpush.bf16.msra.mxu0 0
      %594 = vmatpush.bf16.msra.mxu0 0
      %595 = vmatpush.bf16.msra.mxu0 %v583
      %596 = vmatpush.bf16.msra.mxu0 %v582
      %597 = vmatmul.bf16.gmra.mxu0 %v587
      %v598 = vpop.f32.mrf.mxu0
      %v599 = vadd.f32 %v572, %v598
      %v600 = vpop.f32.mrf.mxu0
      %601 = vdwg.mxu0
      %v602 = vmax.f32 %v599, 0.0
      %v603 = vpack.c.bf16 %v602, %v602
      %v604 = vld [vmem:[%s7] sm:$0xf]
      %v605 = vld [vmem:[%s7 + $0x4] sm:$0xf]
      %v606 = vld [vmem:[%s7 + $0x8] sm:$0xf]
      %v607 = vld [vmem:[%s7 + $0xc] sm:$0xf]
      %v608 = vld [vmem:[%s8] sm:$0x1]
      %v610 = vperm.slane %v608, 0
      %v616 = vunpack.c.l.b16 %v604
      %v617 = vunpack.c.l.b16 %v605
      %v618 = vunpack.c.l.b16 %v606
      %v619 = vunpack.c.l.b16 %v607
      %v620 = vpack.c.b16 %v617, %v616
      %v621 = vpack.c.b16 %v619, %v618
      %v625 = vsel %vm505, %v603, 0
      %627 = vmatpush.bf16.msra.mxu0 0
      %628 = vmatpush.bf16.msra.mxu0 0
      %629 = vmatpush.bf16.msra.mxu0 0
      %630 = vmatpush.bf16.msra.mxu0 0
      %631 = vmatpush.bf16.msra.mxu0 0
      %632 = vmatpush.bf16.msra.mxu0 0
      %633 = vmatpush.bf16.msra.mxu0 %v621
      %634 = vmatpush.bf16.msra.mxu0 %v620
      %635 = vmatmul.bf16.gmra.mxu0 %v625
      %v636 = vpop.f32.mrf.mxu0
      %v637 = vadd.f32 %v610, %v636
      %v638 = vpop.f32.mrf.mxu0
      %639 = vdwg.mxu0
      %v640 = vmax.f32 %v637, 0.0
      %v641 = vpack.c.bf16 %v640, %v640
      %v642 = vld [vmem:[%s9] sm:$0xf]
      %v643 = vld [vmem:[%s9 + $0x4] sm:$0xf]
      %v644 = vld [vmem:[%s9 + $0x8] sm:$0xf]
      %v645 = vld [vmem:[%s9 + $0xc] sm:$0xf]
      %v646 = vld [vmem:[%s10] sm:$0x1]
      %v648 = vperm.slane %v646, 0
      %v654 = vunpack.c.l.b16 %v642
      %v655 = vunpack.c.l.b16 %v643
      %v656 = vunpack.c.l.b16 %v644
      %v657 = vunpack.c.l.b16 %v645
      %v658 = vpack.c.b16 %v655, %v654
      %v659 = vpack.c.b16 %v657, %v656
      %v663 = vsel %vm505, %v641, 0
      %665 = vmatpush.bf16.msra.mxu0 0
      %666 = vmatpush.bf16.msra.mxu0 0
      %667 = vmatpush.bf16.msra.mxu0 0
      %668 = vmatpush.bf16.msra.mxu0 0
      %669 = vmatpush.bf16.msra.mxu0 0
      %670 = vmatpush.bf16.msra.mxu0 0
      %671 = vmatpush.bf16.msra.mxu0 %v659
      %672 = vmatpush.bf16.msra.mxu0 %v658
      %673 = vmatmul.bf16.gmra.mxu0 %v663
      %v674 = vpop.f32.mrf.mxu0
      %v675 = vadd.f32 %v648, %v674
      %v676 = vpop.f32.mrf.mxu0
      %677 = vdwg.mxu0
      %v678 = vmax.f32 %v675, 0.0
      %v679 = vpack.c.bf16 %v678, %v678
      %v680 = vld [vmem:[%s11] sm:$0xf]
      %v681 = vld [vmem:[%s11 + $0x4] sm:$0xf]
      %v682 = vld [vmem:[%s11 + $0x8] sm:$0xf]
      %v683 = vld [vmem:[%s11 + $0xc] sm:$0xf]
      %v684 = vld [vmem:[%s12] sm:$0x1]
      %v686 = vperm.slane %v684, 0
      %v692 = vunpack.c.l.b16 %v680
      %v693 = vunpack.c.l.b16 %v681
      %v694 = vunpack.c.l.b16 %v682
      %v695 = vunpack.c.l.b16 %v683
      %v696 = vpack.c.b16 %v693, %v692
      %v697 = vpack.c.b16 %v695, %v694
      %v701 = vsel %vm505, %v679, 0
      %703 = vmatpush.bf16.msra.mxu0 0
      %704 = vmatpush.bf16.msra.mxu0 0
      %705 = vmatpush.bf16.msra.mxu0 0
      %706 = vmatpush.bf16.msra.mxu0 0
      %707 = vmatpush.bf16.msra.mxu0 0
      %708 = vmatpush.bf16.msra.mxu0 0
      %709 = vmatpush.bf16.msra.mxu0 %v697
      %710 = vmatpush.bf16.msra.mxu0 %v696
      %711 = vmatmul.bf16.gmra.mxu0 %v701
      %v712 = vpop.f32.mrf.mxu0
      %v713 = vadd.f32 %v686, %v712
      %v714 = vpop.f32.mrf.mxu0
      %715 = vdwg.mxu0
      %v716 = vlaneseq
      %v717 = vand.u32 %v716, 127
      %v718 = vmax.f32 %v713, 0.0
      %v719 = vand.u32 2147483647, %v713
      %v720 = vsub.f32 0.0, %v719
      %v721 = vmul.f32 %v720, 1.442695
      %v722 = vpow.pop %v721
      %v723 = vadd.f32 %v722, 1.0
      %v724 = vlog2.pop %v723
      %v725 = vmul.f32 %v724, 0.6931472
      %v726 = vmul.f32 -0.5, %v722
      %v727 = vadd.f32 %v726, 1.0
      %v728 = vmul.f32 %v727, %v722
      %v729 = vand.u32 2147483647, %v722
      %vm730 = vcmp.lt.f32.partialorder %v729, 0.0004427343
      %v731 = vsel %vm730, %v728, %v725
      %v732 = vadd.f32 %v718, %v731
      %v733 = vmul.f32 %v732, 0.9
      %v734 = vadd.f32 %v733, 0.1
      %vm735 = vcmp.ge.s32.totalorder %v717, 1
      %v736 = vsel %vm735, %v734, %v713
      %vm737 = vcmask 15360
      %738 = vst.msk [vmem:[%s480] sm:$0xff] %vm737, %v736
      %p739 = scmp.lt.s32.totalorder %s28, 1
      %s740 = scalar_select %p739, %s28, 1
      %p741 = scmp.lt.s32.totalorder %s29, 0
      %s742 = scalar_select %p741, %s29, 0
      %s743 = sadd.s32 %s742, %s740
      %s744 = smul.addr %s743, 8
      %s745 = scalar_lea.vmem %s13, %s744
      // Predicated region
      $region73: #{decoder_forward.1} parent=71 // pred_check
        %p746 = pneg %p341
      $region74: #{decoder_forward.1} parent=71 // pred_check_branch
        %748 = sbr.rel (%p746) target = $region76
      $region75: #{decoder_forward.1} parent=71 // pred_region
        _
      $region76: #{decoder_forward.1} parent=71 // pred_fallthru
        _
    $region72: #{decoder_forward.1} parent=5 // pred_fallthru
      _
    %p749 = scmp.le.s32.totalorder 2, %s19
    // Predicated region
    $region77: #{decoder_forward.1} parent=5 // pred_check
      %p750 = pneg %p749
    $region78: #{decoder_forward.1} parent=5 // pred_check_branch
      %752 = sbr.rel (%p750) target = $region80
    $region79: #{decoder_forward.1} parent=5 // pred_region
      %s753 = ssub.s32 %s19, 2
      // Predicated region
      $region81: #{decoder_forward.1} parent=79 // pred_check
        %p754 = pneg %p347
      $region82: #{decoder_forward.1} parent=79 // pred_check_branch
        %756 = sbr.rel (%p754) target = $region84
      $region83: #{decoder_forward.1} parent=79 // pred_region
        %p757 = scmp.lt.s32.totalorder %s30, 1
        %s758 = scalar_select %p757, %s30, 1
        %p759 = scmp.lt.s32.totalorder %s31, 0
        %s760 = scalar_select %p759, %s31, 0
        %s761 = sadd.s32 %s760, %s758
        %s762 = smul.addr %s761, 8
        %s763 = scalar_lea.vmem %s13, %s762
      $region84: #{decoder_forward.1} parent=79 // pred_fallthru
        _
    $region80: #{decoder_forward.1} parent=5 // pred_fallthru
      _
  $region6: #{decoder_forward.1} parent=0 // loop_footer
    %s23 = sadd.s32 1, %s19
  $region7: #{decoder_forward.1} parent=0 // loop_footer_branch
    %18 = sbr.rel target = $region3
  $region8: #{decoder_forward.1} parent=0 // loop_exit
    _

</llo_original>
